<compile_context>
chip_gen: v7x
topology: tpu7x:2x2x1
jax: 0.10.0
libtpu: 0.0.40
codegen_flags: <defaults>
</compile_context>

<pallas_src>
import functools

import jax
import jax.numpy as jnp
from jax import lax
from jax.experimental import pallas as pl
from jax.experimental.pallas import tpu as pltpu

_EPS = 1e-3                       # BatchNorm2d(eps=0.001)
_TN = 128                         # Cout tile width (lane-dense stores)
_CIN_CHUNK = 128                  # channel chunk for stack / pool builds
_VMEM_LIMIT = 40 * 1024 * 1024    # worst-case working set ~25 MiB (v7x: 64 MiB/TC)

# (cin, c1, c3r, c3, c5r, c5, cpool) for blocks 3a..5b
_CFG = [
    (192, 64, 96, 128, 16, 32, 32),
    (256, 128, 128, 192, 32, 96, 64),
    (480, 192, 96, 208, 16, 48, 64),
    (512, 160, 112, 224, 24, 64, 64),
    (512, 128, 128, 256, 24, 64, 64),
    (512, 112, 144, 288, 32, 64, 64),
    (528, 256, 160, 320, 32, 128, 128),
    (832, 256, 160, 320, 32, 128, 128),
    (832, 384, 192, 384, 48, 128, 128),
]

_OFFSETS_3X3 = tuple((dy, dx) for dy in (-1, 0, 1) for dx in (-1, 0, 1))


def _round_up(n, m):
    return ((n + m - 1) // m) * m


# --------------------------- roll-direction probe ----------------------------

_ROLL_IS_JNP_LIKE = None


def _roll_matches_jnp():
    """True iff pltpu.roll(x, shift=s, axis=0)[i] == x[(i - s) % n] (jnp.roll)."""
    global _ROLL_IS_JNP_LIKE
    if _ROLL_IS_JNP_LIKE is None:
        def probe(x_ref, o_ref):
            o_ref[...] = pltpu.roll(x_ref[...], shift=1, axis=0)

        x = jnp.broadcast_to(jnp.arange(8, dtype=jnp.float32)[:, None], (8, 128))
        out = pl.pallas_call(
            probe, out_shape=jax.ShapeDtypeStruct((8, 128), jnp.float32))(x)
        _ROLL_IS_JNP_LIKE = bool(out[0, 0] == 7.0)
    return _ROLL_IS_JNP_LIKE


def _roll_by(x, delta, axis, size):
    """result[i] = x[(i + delta) % size] along `axis` (delta is a Python int)."""
    shift = (-delta) % size if _roll_matches_jnp() else delta % size
    return pltpu.roll(x, shift=shift, axis=axis)


# ------------------------------ in-kernel helpers -----------------------------

def _row_col_iota(M, H, W):
    r = lax.broadcasted_iota(jnp.int32, (M, 1), 0)
    return (r // W) % H, r % W


def _bn_relu(acc, gamma, beta, out_dtype):
    """Training-mode BatchNorm (batch mean / biased var over M rows) + ReLU."""
    inv_m = 1.0 / acc.shape[0]
    mean = jnp.sum(acc, axis=0, keepdims=True) * inv_m
    var = jnp.sum(acc * acc, axis=0, keepdims=True) * inv_m - mean * mean
    scale = gamma * lax.rsqrt(var + _EPS)
    return jnp.maximum((acc - mean) * scale + beta, 0.0).astype(out_dtype)


# ----------------------- fused Conv + BN + ReLU kernels -----------------------

def _conv1x1_bn_relu_kernel(x_ref, w_ref, g_ref, b_ref, o_ref):
    """Conv1x1 + BN(batch stats) + ReLU for one 128-wide Cout tile."""
    acc = jnp.dot(x_ref[...], w_ref[...], preferred_element_type=jnp.float32)
    o_ref[...] = _bn_relu(acc, g_ref[...], b_ref[...], o_ref.dtype)


def _conv3x3_bn_relu_kernel(x_ref, w_ref, g_ref, b_ref, o_ref, stack_ref, *, H, W):
    """Conv(3x3, pad=1, bias=False) + BN(batch stats) + ReLU, one Cout tile.

    x_ref     : (M, Cin)    bf16, M = N*H*W, NHWC-flattened (full block)
    w_ref     : (9*Cin, TN) bf16, rows ordered (kh, kw, cin)
    g_ref/b_ref: (1, TN)    f32 gamma / beta
    o_ref     : (M, TN)     bf16
    stack_ref : (M, 9*Cin)  bf16 scratch, column block t holds x shifted by tap t
    """
    M, cin = x_ref.shape

    # Build the shifted/masked tap stack once per call; the grid axis is
    # "arbitrary" so the scratch persists and later Cout tiles only GEMM.
    @pl.when(pl.program_id(0) == 0)
    def _build_stack():
        row, col = _row_col_iota(M, H, W)
        for c0 in range(0, cin, _CIN_CHUNK):
            c1 = min(c0 + _CIN_CHUNK, cin)
            xc = x_ref[:, c0:c1]
            xc32 = xc.astype(jnp.float32)
            for t, (oy, ox) in enumerate(_OFFSETS_3X3):
                lo, hi = t * cin + c0, t * cin + c1
                if oy == 0 and ox == 0:
                    stack_ref[:, lo:hi] = xc
                    continue
                # tap (oy, ox): source row = r + oy*W + ox (same image), 0 if OOB.
                shifted = _roll_by(xc32, oy * W + ox, 0, M)
                ok = None
                if oy == 1:
                    ok = row < H - 1
                elif oy == -1:
                    ok = row >= 1
                if ox == 1:
                    okx = col < W - 1
                    ok = okx if ok is None else jnp.logical_and(ok, okx)
                elif ox == -1:
                    okx = col >= 1
                    ok = okx if ok is None else jnp.logical_and(ok, okx)
                stack_ref[:, lo:hi] = jnp.where(ok, shifted, 0.0).astype(stack_ref.dtype)

    acc = jnp.dot(stack_ref[...], w_ref[...], preferred_element_type=jnp.float32)
    o_ref[...] = _bn_relu(acc, g_ref[...], b_ref[...], o_ref.dtype)


def _pool_conv1x1_bn_relu_kernel(x_ref, w_ref, g_ref, b_ref, o_ref, pool_ref, *, H, W):
    """MaxPool2d(3, stride=1, pad=1) fused with Conv1x1 + BN + ReLU (branch 4)."""
    M, cin = x_ref.shape

    @pl.when(pl.program_id(0) == 0)
    def _pool():
        row, col = _row_col_iota(M, H, W)
        has_l = col >= 1
        has_r = col < W - 1
        has_u = row >= 1
        has_d = row < H - 1
        for c0 in range(0, cin, _CIN_CHUNK):
            c1 = min(c0 + _CIN_CHUNK, cin)
            xc = x_ref[:, c0:c1].astype(jnp.float32)
            # separable 3x3 max: horizontal (ox = +-1) then vertical (oy = +-1).
            h = jnp.maximum(xc, jnp.where(has_l, _roll_by(xc, -1, 0, M), xc))
            h = jnp.maximum(h, jnp.where(has_r, _roll_by(xc, 1, 0, M), xc))
            m = jnp.maximum(h, jnp.where(has_u, _roll_by(h, -W, 0, M), h))
            m = jnp.maximum(m, jnp.where(has_d, _roll_by(h, W, 0, M), h))
            pool_ref[:, c0:c1] = m.astype(pool_ref.dtype)

    acc = jnp.dot(pool_ref[...], w_ref[...], preferred_element_type=jnp.float32)
    o_ref[...] = _bn_relu(acc, g_ref[...], b_ref[...], o_ref.dtype)


# ------------------------------- conv wrappers --------------------------------

def _conv_bn_relu_1x1(x2d, p):
    M, cin = x2d.shape
    cpad = p["w"].shape[1]
    return pl.pallas_call(
        _conv1x1_bn_relu_kernel,
        out_shape=jax.ShapeDtypeStruct((M, cpad), jnp.bfloat16),
        grid=(cpad // _TN,),
        in_specs=[
            pl.BlockSpec((M, cin), lambda j: (0, 0)),
            pl.BlockSpec((cin, _TN), lambda j: (0, j)),
            pl.BlockSpec((1, _TN), lambda j: (0, j)),
            pl.BlockSpec((1, _TN), lambda j: (0, j)),
        ],
        out_specs=pl.BlockSpec((M, _TN), lambda j: (0, j)),
        compiler_params=pltpu.CompilerParams(
            dimension_semantics=("parallel",),
            vmem_limit_bytes=_VMEM_LIMIT),
    )(x2d, p["w"], p["g"], p["b"])


def _conv_bn_relu_3x3(x2d, p, H, W):
    M, cin = x2d.shape
    cpad = p["w"].shape[1]
    kern = functools.partial(_conv3x3_bn_relu_kernel, H=H, W=W)
    # TODO(synk): on v7x the single "arbitrary" axis leaves the 2nd TensorCore
    # idle; an M-split parallel axis with a partial-BN-stat combine would fix it.
    return pl.pallas_call(
        kern,
        out_shape=jax.ShapeDtypeStruct((M, cpad), jnp.bfloat16),
        grid=(cpad // _TN,),
        in_specs=[
            pl.BlockSpec((M, cin), lambda j: (0, 0)),
            pl.BlockSpec((9 * cin, _TN), lambda j: (0, j)),
            pl.BlockSpec((1, _TN), lambda j: (0, j)),
            pl.BlockSpec((1, _TN), lambda j: (0, j)),
        ],
        out_specs=pl.BlockSpec((M, _TN), lambda j: (0, j)),
        scratch_shapes=[pltpu.VMEM((M, 9 * cin), jnp.bfloat16)],
        compiler_params=pltpu.CompilerParams(
            dimension_semantics=("arbitrary",),   # tap stack reused across tiles
            vmem_limit_bytes=_VMEM_LIMIT),
    )(x2d, p["w"], p["g"], p["b"])


def _pool_conv_bn_relu(x2d, p, H, W):
    M, cin = x2d.shape
    cpad = p["w"].shape[1]
    kern = functools.partial(_pool_conv1x1_bn_relu_kernel, H=H, W=W)
    return pl.pallas_call(
        kern,
        out_shape=jax.ShapeDtypeStruct((M, cpad), jnp.bfloat16),
        grid=(cpad // _TN,),
        in_specs=[
            pl.BlockSpec((M, cin), lambda j: (0, 0)),
            pl.BlockSpec((cin, _TN), lambda j: (0, j)),
            pl.BlockSpec((1, _TN), lambda j: (0, j)),
            pl.BlockSpec((1, _TN), lambda j: (0, j)),
        ],
        out_specs=pl.BlockSpec((M, _TN), lambda j: (0, j)),
        scratch_shapes=[pltpu.VMEM((M, cin), jnp.bfloat16)],
        compiler_params=pltpu.CompilerParams(
            dimension_semantics=("arbitrary",),
            vmem_limit_bytes=_VMEM_LIMIT),
    )(x2d, p["w"], p["g"], p["b"])


# --------------------------- stride-2 maxpool kernel --------------------------

def _pool3x3_s1_nhwc(x):
    """3x3 max pool, stride 1, padding 1 on a (1, H, W, C) f32 block."""
    H, W, C = x.shape[1], x.shape[2], x.shape[3]
    neg = jnp.asarray(jnp.finfo(jnp.float32).min, jnp.float32)
    wi = lax.broadcasted_iota(jnp.int32, x.shape, 2)
    left = jnp.where(wi == 0, neg, _roll_by(x, -1, 2, W))        # x[w-1]
    right = jnp.where(wi == W - 1, neg, _roll_by(x, 1, 2, W))    # x[w+1]
    m = jnp.maximum(jnp.maximum(left, right), x)
    pad = jnp.full((1, 1, W, C), neg, jnp.float32)
    up = jnp.concatenate([pad, m[:, :H - 1]], axis=1)            # m[h-1]
    down = jnp.concatenate([m[:, 1:], pad], axis=1)              # m[h+1]
    return jnp.maximum(jnp.maximum(up, down), m)


def _maxpool_s2_kernel(x_ref, o_ref, e_scr):
    # stride-2 result = stride-1 result sampled at even (h, w).
    H, W, C = x_ref.shape[1], x_ref.shape[2], x_ref.shape[3]
    m = _pool3x3_s1_nhwc(x_ref[...].astype(jnp.float32))          # (1, H, W, C)
    even_rows = m.reshape(1, H // 2, 2, W, C)[:, :, 0]            # leading dims only
    e_scr[...] = even_rows[0]                                     # (H/2, W, C) f32
    o_ref[0] = e_scr[:, pl.ds(0, W // 2, 2), :].astype(o_ref.dtype)


def _maxpool_s2(x):
    """MaxPool2d(kernel_size=3, stride=2, padding=1) on an NHWC input."""
    N, H, W, C = x.shape
    Ho, Wo = H // 2, W // 2
    return pl.pallas_call(
        _maxpool_s2_kernel,
        out_shape=jax.ShapeDtypeStruct((N, Ho, Wo, C), x.dtype),
        grid=(N,),
        in_specs=[pl.BlockSpec((1, H, W, C), lambda n: (n, 0, 0, 0))],
        out_specs=pl.BlockSpec((1, Ho, Wo, C), lambda n: (n, 0, 0, 0)),
        scratch_shapes=[pltpu.VMEM((Ho, W, C), jnp.float32)],
        compiler_params=pltpu.CompilerParams(
            dimension_semantics=("parallel",),
            vmem_limit_bytes=_VMEM_LIMIT),
    )(x)


# -------------------------- AvgPool(8) + Linear head --------------------------

def _avgpool_fc_kernel(x_ref, w_ref, b_ref, o_ref):
    pooled = jnp.mean(x_ref[...].astype(jnp.float32), axis=1)     # (N, C)
    o_ref[...] = jnp.dot(pooled, w_ref[...],
                         preferred_element_type=jnp.float32) + b_ref[...]


def _avgpool_fc(x3d, w, b):
    N, HW, C = x3d.shape
    cout = w.shape[1]
    return pl.pallas_call(
        _avgpool_fc_kernel,
        out_shape=jax.ShapeDtypeStruct((N, cout), jnp.float32),
        grid=(1,),
        in_specs=[pl.BlockSpec((N, HW, C), lambda i: (0, 0, 0)),
                  pl.BlockSpec((C, cout), lambda i: (0, 0)),
                  pl.BlockSpec((1, cout), lambda i: (0, 0))],
        out_specs=pl.BlockSpec((N, cout), lambda i: (0, 0)),
        compiler_params=pltpu.CompilerParams(vmem_limit_bytes=_VMEM_LIMIT),
    )(x3d, w, b.reshape(1, cout))


# --------------------------------- parameters ---------------------------------

def make_conv_block_params(key, cin, cout, k):
    k1, k2, k3 = jax.random.split(key, 3)
    return {
        "w": 0.1 * jax.random.normal(k1, (cout, cin, k, k), jnp.float32),
        "gamma": 1.0 + 0.1 * jax.random.normal(k2, (cout,), jnp.float32),
        "beta": 0.1 * jax.random.normal(k3, (cout,), jnp.float32),
    }


def make_inception_params(key, cin, c1, c3r, c3, c5r, c5, cpool):
    ks = jax.random.split(key, 7)
    return {
        "b1": make_conv_block_params(ks[0], cin, c1, 1),
        "b2_1": make_conv_block_params(ks[1], cin, c3r, 1),
        "b2_2": make_conv_block_params(ks[2], c3r, c3, 3),
        "b3_1": make_conv_block_params(ks[3], cin, c5r, 1),
        "b3_2": make_conv_block_params(ks[4], c5r, c5, 3),
        "b3_3": make_conv_block_params(ks[5], c5, c5, 3),
        "b4": make_conv_block_params(ks[6], cin, cpool, 1),
    }


def make_params(key, in_channel, out_channel):
    ks = jax.random.split(key, 11)
    params = {"first": make_conv_block_params(ks[0], in_channel, 192, 3)}
    params["inception"] = [
        make_inception_params(ks[i + 1], *c) for i, c in enumerate(_CFG)
    ]
    kw, kb = jax.random.split(ks[10], 2)
    params["fc_w"] = 0.05 * jax.random.normal(kw, (1024, out_channel), jnp.float32)
    params["fc_b"] = 0.05 * jax.random.normal(kb, (out_channel,), jnp.float32)
    return params


def _pack_1x1(blocks):
    """Concatenate 1x1 ConvBlocks sharing the same input; each branch's Cout is
    padded to a multiple of 128 (zero weights, gamma=1, beta=0 -> exact zeros)."""
    ws, gs, bs, pads = [], [], [], []
    for blk in blocks:
        w = blk["w"][:, :, 0, 0]                                  # (cout, cin)
        cout = w.shape[0]
        cpad = _round_up(cout, _TN)
        ws.append(jnp.pad(w.T, ((0, 0), (0, cpad - cout))))       # (cin, cpad)
        gs.append(jnp.pad(blk["gamma"], (0, cpad - cout), constant_values=1.0))
        bs.append(jnp.pad(blk["beta"], (0, cpad - cout)))
        pads.append(cpad)
    return {
        "w": jnp.concatenate(ws, axis=1).astype(jnp.bfloat16),
        "g": jnp.concatenate(gs).reshape(1, -1).astype(jnp.float32),
        "b": jnp.concatenate(bs).reshape(1, -1).astype(jnp.float32),
    }, pads


def _pack_3x3(blk, cin_pad=None):
    """(cout, cin, 3, 3) -> (9*cinp, cpad) bf16 with rows ordered (kh, kw, cin)."""
    w = blk["w"]
    cout, cin = w.shape[0], w.shape[1]
    cinp = cin if cin_pad is None else cin_pad
    cpad = _round_up(cout, _TN)
    w = jnp.pad(w, ((0, cpad - cout), (0, cinp - cin), (0, 0), (0, 0)))
    wt = jnp.transpose(w, (2, 3, 1, 0)).reshape(9 * cinp, cpad)
    return {
        "w": wt.astype(jnp.bfloat16),
        "g": jnp.pad(blk["gamma"], (0, cpad - cout),
                     constant_values=1.0).reshape(1, -1).astype(jnp.float32),
        "b": jnp.pad(blk["beta"], (0, cpad - cout)).reshape(1, -1).astype(jnp.float32),
    }


def prepare_params(params):
    _roll_matches_jnp()   # resolve the roll-direction probe before any tracing
    prepared = {"first": _pack_3x3(params["first"])}
    blocks = []
    for p, cfg in zip(params["inception"], _CFG):
        _, c1, c3r, c3, c5r, c5, _ = cfg
        p2 = _round_up(c3r, _TN)
        p3 = _round_up(c5r, _TN)
        merged, _ = _pack_1x1([p["b1"], p["b2_1"], p["b3_1"]])
        b4, _ = _pack_1x1([p["b4"]])
        blocks.append({
            "merged": merged,
            "b2_2": _pack_3x3(p["b2_2"], cin_pad=p2),
            "b3_2": _pack_3x3(p["b3_2"], cin_pad=p3),
            "b3_3": _pack_3x3(p["b3_3"], cin_pad=_round_up(c5, _TN)),
            "b4": b4,
        })
    prepared["inception"] = blocks
    prepared["fc_w"] = params["fc_w"].astype(jnp.float32)
    prepared["fc_b"] = params["fc_b"].astype(jnp.float32)
    return prepared


# --------------------------------- forward pass --------------------------------

def _inception(x, p, cfg):
    cin, c1, c3r, c3, c5r, c5, cpool = cfg
    N, H, W, C = x.shape
    M = N * H * W
    x2d = x.reshape(M, C)
    p1 = _round_up(c1, _TN)
    p2 = _round_up(c3r, _TN)

    # merged 1x1 GEMM for the three reduce branches reading x (per-branch padded
    # to 128 -> lane-aligned slices below, lane-dense Cin for the 3x3 convs).
    merged = _conv_bn_relu_1x1(x2d, p["merged"])
    y1 = merged[:, :c1]
    y2 = _conv_bn_relu_3x3(merged[:, p1:p1 + p2], p["b2_2"], H, W)[:, :c3]
    t = _conv_bn_relu_3x3(merged[:, p1 + p2:], p["b3_2"], H, W)   # keep padded
    y3 = _conv_bn_relu_3x3(t, p["b3_3"], H, W)[:, :c5]
    y4 = _pool_conv_bn_relu(x2d, p["b4"], H, W)[:, :cpool]        # fused maxpool(s1)+1x1

    out = jnp.concatenate([y1, y2, y3, y4], axis=-1)
    return out.reshape(N, H, W, c1 + c3 + c5 + cpool)


def inception_forward(params, x_nchw):
    x = jnp.transpose(x_nchw, (0, 2, 3, 1)).astype(jnp.bfloat16)  # NCHW -> NHWC
    N, H, W, Cin = x.shape
    y = _conv_bn_relu_3x3(x.reshape(N * H * W, Cin), params["first"], H, W)[:, :192]
    x = y.reshape(N, H, W, 192)
    for i, cfg in enumerate(_CFG):
        x = _inception(x, params["inception"][i], cfg)
        if i in (1, 6):                 # MaxPool(3, stride=2, pad=1) after 3b, 4e
            x = _maxpool_s2(x)
    N, H, W, C = x.shape                # (N, 8, 8, 1024)
    return _avgpool_fc(x.reshape(N, H * W, C), params["fc_w"], params["fc_b"])


# ------------------------- pure-JAX reference helpers --------------------------

def _ref_convblock(x_nhwc_f32, blk, k):
    """f32 reference ConvBlock (conv + training-mode BN + ReLU), bf16 weights."""
    w = blk["w"].astype(jnp.bfloat16).astype(jnp.float32)
    w = jnp.transpose(w, (2, 3, 1, 0))                            # HWIO
    y = lax.conv_general_dilated(
        x_nhwc_f32, w, window_strides=(1, 1), padding=[(k // 2, k // 2)] * 2,
        dimension_numbers=("NHWC", "HWIO", "NHWC"))
    mean = jnp.mean(y, axis=(0, 1, 2))
    var = jnp.mean(jnp.square(y - mean), axis=(0, 1, 2))
    yhat = (y - mean) * blk["gamma"] * lax.rsqrt(var + _EPS) + blk["beta"]
    return jnp.maximum(yhat, 0.0)


def _assert_close(got, ref, name):
    err = float(jnp.max(jnp.abs(got.astype(jnp.float32) - ref.astype(jnp.float32))))
    bound = 0.05 * float(jnp.max(jnp.abs(ref))) + 0.05
    assert err <= bound, f"{name}: max abs err {err} > {bound}"


if __name__ == "__main__":
    key = jax.random.PRNGKey(0)
    pkey, xkey, tkey = jax.random.split(key, 3)
    # Smallest spatial size consistent with AvgPool2d(8) + Linear(1024, .) is 32x32.
    in_channel, out_channel = 3, 10
    raw = make_params(pkey, in_channel, out_channel)
    params = prepare_params(raw)
    x = jax.random.normal(xkey, (2, in_channel, 32, 32), jnp.float32)  # NCHW

    # ---- numerical self-checks against pure-JAX references (loose bf16 tol) ----
    xb = jnp.transpose(x, (0, 2, 3, 1)).astype(jnp.bfloat16)
    got = _conv_bn_relu_3x3(xb.reshape(-1, in_channel), params["first"], 32, 32)[:, :192]
    ref = _ref_convblock(xb.astype(jnp.float32), raw["first"], 3).reshape(-1, 192)
    _assert_close(got, ref, "conv3x3+bn+relu (first layer)")

    k1, k2 = jax.random.split(tkey)
    blk = make_conv_block_params(k1, 192, 64, 1)
    packed, _ = _pack_1x1([blk])
    xs = jax.random.normal(k2, (2, 16, 16, 192), jnp.float32).astype(jnp.bfloat16)
    got = _pool_conv_bn_relu(xs.reshape(-1, 192), packed, 16, 16)[:, :64]
    pooled = lax.reduce_window(xs.astype(jnp.float32), -jnp.inf, lax.max,
                               (1, 3, 3, 1), (1, 1, 1, 1),
                               [(0, 0), (1, 1), (1, 1), (0, 0)])
    _assert_close(got, _ref_convblock(pooled, blk, 1).reshape(-1, 64),
                  "fused maxpool(s1)+conv1x1")

    got = _maxpool_s2(xs)
    ref = lax.reduce_window(xs.astype(jnp.float32), -jnp.inf, lax.max,
                            (1, 3, 3, 1), (1, 2, 2, 1),
                            [(0, 0), (1, 1), (1, 1), (0, 0)])
    _assert_close(got, ref, "maxpool stride 2")

    # ------------------------------- full forward -------------------------------
    fwd = jax.jit(inception_forward)
    out = fwd(params, x)
    jax.block_until_ready(out)
    assert out.shape == (2, out_channel)
    assert bool(jnp.all(jnp.isfinite(out)))
    print("KERNEL_OK")
</pallas_src>

<mosaic_0001>
module attributes {stable_mosaic.version = 11 : i64} {
  func.func @probe(%arg0: memref<8x128xf32, #tpu.memory_space<vmem>>, %arg1: memref<8x128xf32, #tpu.memory_space<vmem>>) attributes {dimension_semantics = [], scalar_prefetch = 0 : i64, scratch_operands = 0 : i64, tpu.core_type = #tpu.core_type<tc>} {
    %c0 = arith.constant 0 : index
    %c0_0 = arith.constant 0 : index
    %0 = vector.load %arg0[%c0, %c0_0] : memref<8x128xf32, #tpu.memory_space<vmem>>, vector<8x128xf32>
    %c1_i32 = arith.constant 1 : i32
    %1 = tpu.dynamic_rotate %0 by %c1_i32 dim 0 : vector<8x128xf32>, i32 -> vector<8x128xf32>
    %c0_1 = arith.constant 0 : index
    %c0_2 = arith.constant 0 : index
    %2 = vector.load %arg1[%c0_1, %c0_2] : memref<8x128xf32, #tpu.memory_space<vmem>>, vector<8x128xf32>
    tpu.vector_store %arg1[%c0_1, %c0_2], %1 {strides = array<i32>} : memref<8x128xf32, #tpu.memory_space<vmem>>, vector<8x128xf32>,
    return
  }
}

</mosaic_0001>

<llo_original>
// kernel: tpu_custom_call.1
$region0: #{tpu_custom_call.1}
  #allocation0 [shape = 'u32[]', space=smem, size = 0x4, offset = 0x4, fixed_abs, tag = 'smem constant byte address 0x4 - core index']
  #allocation1 [shape = 'u32[144,128]{1,0:T(1,128)}', space=vmem, size = 0x12000, scoped, tag = 'internal scratch']
  %s0 = inlined_call_operand.hbm [shape: f32[8,128], index: 0, kind: input, shape index: {}]
  %s1 = inlined_call_operand.hbm [shape: f32[8,128], index: 1, kind: output, shape index: {}]
  %s2 = sld [smem:[#allocation0]]
  $region18: #{tpu_custom_call.1} parent=0
    _
  %s4 = ssub.s32 1, %s2
  %s5 = scalar_select 0, %s4, %s2
  $region1: #{tpu_custom_call.1} parent=0
    #allocation2 [shape = 'u8[4096]{0}', space=vmem, size = 0x1000, scoped, tag = 'input window, operand 0, single buffered']
    #allocation3 [shape = 's32[1]{0}', space=sflag, size = 0x4, scoped, tag = 'scoped memory for tpu_custom_call.1']
    #allocation4 [shape = 's32[1]{0}', space=sflag, size = 0x4, scoped, tag = 'scoped memory for tpu_custom_call.1']
    #allocation5 [shape = 'u8[4096]{0}', space=vmem, size = 0x1000, scoped, tag = 'output window, operand 0, single buffered']
    %6 = vsyncpa [#allocation3], 0
    %7 = vsyncpa [#allocation4], 0
    // Predicated region
    $region2: #{tpu_custom_call.1} parent=1 // pred_check
      _
    $region3: #{tpu_custom_call.1} parent=1 // pred_check_branch
      %9 = sbr.rel (0) target = $region5
    $region4: #{tpu_custom_call.1} parent=1 // pred_region
      %s11 = ssub.s32 128, 128
      %12 = vsyncadd [#allocation3], %s11
      %s14 = sshll.u32 [#allocation2], 4
      %s15 = int_to_ptr.vmem [resolvable:$true] %s14
      %17 = dma.hbm_to_vmem [thread:$0]  %s0, 128, %s15, [#allocation3]
    $region5: #{tpu_custom_call.1} parent=1 // pred_fallthru
      _
    // Predicated region
    $region6: #{tpu_custom_call.1} parent=1 // pred_check
      _
    $region7: #{tpu_custom_call.1} parent=1 // pred_check_branch
      %19 = sbr.rel (0) target = $region9
    $region8: #{tpu_custom_call.1} parent=1 // pred_region
      %20 = dma.done [#allocation3], 128
    $region9: #{tpu_custom_call.1} parent=1 // pred_fallthru
      _
    %v21 = vld [vmem:[#allocation2] sm:$0xff]
    %v22 = vrot.slane %v21, 7
    %23 = vst [vmem:[#allocation5] sm:$0xff] %v22
    // Predicated region
    $region10: #{tpu_custom_call.1} parent=1 // pred_check
      _
    $region11: #{tpu_custom_call.1} parent=1 // pred_check_branch
      %25 = sbr.rel (0) target = $region13
    $region12: #{tpu_custom_call.1} parent=1 // pred_region
      %s27 = ssub.s32 128, 128
      %28 = vsyncadd [#allocation4], %s27
      %s30 = sshll.u32 [#allocation5], 4
      %s31 = int_to_ptr.vmem [resolvable:$true] %s30
      %33 = dma.vmem_to_hbm [thread:$0]  %s31, 128, %s1, [#allocation4]
    $region13: #{tpu_custom_call.1} parent=1 // pred_fallthru
      _
    // Predicated region
    $region14: #{tpu_custom_call.1} parent=1 // pred_check
      _
    $region15: #{tpu_custom_call.1} parent=1 // pred_check_branch
      %35 = sbr.rel (0) target = $region17
    $region16: #{tpu_custom_call.1} parent=1 // pred_region
      %36 = dma.done [#allocation4], 128
    $region17: #{tpu_custom_call.1} parent=1 // pred_fallthru
      _
    %37 = vsyncpa [#allocation3], 1
    %38 = vsyncpa [#allocation4], 1

</llo_original>
